<compile_context>
chip_gen: v7x
topology: tpu7x:2x2x1
jax: 0.10.0
libtpu: 0.0.40
codegen_flags: <defaults>
</compile_context>

<pallas_src>
import jax
import jax.numpy as jnp
from jax.experimental import pallas as pl
from jax.experimental.pallas import tpu as pltpu

Z_DIM = 32        # opt['z_dim'] for this synthetic instance
HIDDEN = 200
N_CLASSES = 10
HPAD = 256        # hidden padded to 2 full 128-lane tiles
OUT_PAD = 128     # logits padded to 1 full 128-lane tile (lane-dense output store)
BN_EPS = 1e-5
NEG_INF = -1e30   # bias for padded logit columns -> exp() underflows to exactly 0


def classnet_kernel(x_ref, w1_ref, w2_ref, vec_ref, out_ref):
    """Fused fc1 -> ReLU -> (Dropout p=0 == identity) -> BatchNorm1d(train) -> fc2 -> softmax.

    vec_ref packs four small per-feature vectors into one (4, HPAD) input DMA:
      row 0: b1    (fc1 bias,  zero-padded)
      row 1: gamma (BN weight, zero-padded -> padded hidden cols stay 0)
      row 2: beta  (BN bias,   zero-padded)
      row 3: b2    (fc2 bias in cols [:N_CLASSES], NEG_INF in padded logit cols)
    """
    x = x_ref[...]                                    # (B, Z)
    B = x.shape[0]

    vec = vec_ref[...]                                # (4, HPAD)
    b1 = vec[0:1, :]                                  # (1, HPAD)
    gamma = vec[1:2, :]
    beta = vec[2:3, :]
    b2 = vec[3:4, :OUT_PAD]                           # (1, OUT_PAD)

    # fc1 + ReLU; padded hidden columns (w1 cols / b1 entries are 0) stay exactly 0.
    h = jnp.dot(x, w1_ref[...], preferred_element_type=jnp.float32)   # (B, HPAD)
    h = jnp.maximum(h + b1, 0.0)

    # nn.Dropout(p=0) is the identity (no RNG needed).

    # BatchNorm1d, training mode (biased batch statistics), single-pass stats:
    # one sum and one sum-of-squares XLU reduction instead of mean + (h-mean)^2 passes.
    s = jnp.sum(h, axis=0, keepdims=True)             # (1, HPAD)
    s2 = jnp.sum(h * h, axis=0, keepdims=True)        # (1, HPAD)
    inv_b = 1.0 / B
    mean = s * inv_b
    var = jnp.maximum(s2 * inv_b - mean * mean, 0.0)  # guard tiny negative cancellation
    scale = gamma * jax.lax.rsqrt(var + BN_EPS)       # gamma folded into the scale
    shift = beta - mean * scale
    hn = h * scale + shift                            # (B, HPAD); padded cols remain 0

    # fc2; padded logit columns are 0 + NEG_INF bias -> vanish in the softmax.
    logits = jnp.dot(hn, w2_ref[...], preferred_element_type=jnp.float32) + b2

    # softmax over the lane-dense padded row.
    m = jnp.max(logits, axis=-1, keepdims=True)
    e = jnp.exp(logits - m)
    denom = jnp.sum(e, axis=-1, keepdims=True)
    out_ref[...] = e * pl.reciprocal(denom, approx=False)


def prepare_params(params):
    """Zero/NEG_INF-pad weights to tile-aligned shapes and pack the small vectors."""
    w1, b1, gamma, beta, w2, b2 = params
    w1p = jnp.zeros((Z_DIM, HPAD), jnp.float32).at[:, :HIDDEN].set(w1)
    w2p = jnp.zeros((HPAD, OUT_PAD), jnp.float32).at[:HIDDEN, :N_CLASSES].set(w2)
    vec = jnp.zeros((4, HPAD), jnp.float32)
    vec = vec.at[0, :HIDDEN].set(b1)
    vec = vec.at[1, :HIDDEN].set(gamma)
    vec = vec.at[2, :HIDDEN].set(beta)
    vec = vec.at[3, :].set(NEG_INF)
    vec = vec.at[3, :N_CLASSES].set(b2)
    return (w1p, w2p, vec)


@jax.jit
def classnet_forward(x, padded_params):
    w1p, w2p, vec = padded_params
    B = x.shape[0]
    vmem = pl.BlockSpec(memory_space=pltpu.MemorySpace.VMEM)
    out_pad = pl.pallas_call(
        classnet_kernel,
        out_shape=jax.ShapeDtypeStruct((B, OUT_PAD), jnp.float32),
        in_specs=[vmem, vmem, vmem, vmem],
        out_specs=vmem,
    )(x, w1p, w2p, vec)
    # Padded probability columns are exactly 0; drop them outside the kernel.
    return out_pad[:, :N_CLASSES]


def init_params(key):
    """Deterministic init mimicking PyTorch nn.Linear default (U(-1/sqrt(fan_in), ..))."""
    k1, k2, k3, k4 = jax.random.split(key, 4)
    bound1 = 1.0 / jnp.sqrt(Z_DIM)
    w1 = jax.random.uniform(k1, (Z_DIM, HIDDEN), jnp.float32, -bound1, bound1)
    b1 = jax.random.uniform(k2, (HIDDEN,), jnp.float32, -bound1, bound1)
    gamma = jnp.ones((HIDDEN,), jnp.float32)     # BatchNorm1d affine init
    beta = jnp.zeros((HIDDEN,), jnp.float32)
    bound2 = 1.0 / jnp.sqrt(HIDDEN)
    w2 = jax.random.uniform(k3, (HIDDEN, N_CLASSES), jnp.float32, -bound2, bound2)
    b2 = jax.random.uniform(k4, (N_CLASSES,), jnp.float32, -bound2, bound2)
    return (w1, b1, gamma, beta, w2, b2)


def classnet_reference(x, params):
    """Pure-JAX reference of the same forward pass (for sanity checking)."""
    w1, b1, gamma, beta, w2, b2 = params
    h = jnp.maximum(x @ w1 + b1, 0.0)
    mean = jnp.mean(h, axis=0, keepdims=True)
    var = jnp.mean((h - mean) ** 2, axis=0, keepdims=True)
    hn = (h - mean) * jax.lax.rsqrt(var + BN_EPS) * gamma + beta
    logits = hn @ w2 + b2
    return jax.nn.softmax(logits, axis=-1)


if __name__ == "__main__":
    key = jax.random.PRNGKey(0)
    k_params, k_x = jax.random.split(key)
    params = init_params(k_params)
    padded_params = prepare_params(params)

    B = 16  # small batch, multiple of 8 sublanes (BN uses batch stats, keep B > 1)
    x = jax.random.normal(k_x, (B, Z_DIM), jnp.float32)

    out = classnet_forward(x, padded_params)
    out = jax.block_until_ready(out)

    ref = classnet_reference(x, params)
    assert out.shape == (B, N_CLASSES)
    assert jnp.allclose(jnp.sum(out, axis=-1), 1.0, atol=1e-5)
    assert jnp.allclose(out, ref, atol=1e-5, rtol=1e-5)

    print("KERNEL_OK")
</pallas_src>

<mosaic_0001>
module attributes {stable_mosaic.version = 11 : i64} {
  func.func @classnet_kernel(%arg0: memref<16x32xf32, #tpu.memory_space<vmem>>, %arg1: memref<32x256xf32, #tpu.memory_space<vmem>>, %arg2: memref<256x128xf32, #tpu.memory_space<vmem>>, %arg3: memref<4x256xf32, #tpu.memory_space<vmem>>, %arg4: memref<16x128xf32, #tpu.memory_space<vmem>>) attributes {dimension_semantics = [], scalar_prefetch = 0 : i64, scratch_operands = 0 : i64, tpu.core_type = #tpu.core_type<tc>} {
    %c0 = arith.constant 0 : index
    %c0_0 = arith.constant 0 : index
    %0 = vector.load %arg0[%c0, %c0_0] : memref<16x32xf32, #tpu.memory_space<vmem>>, vector<16x32xf32>
    %c0_1 = arith.constant 0 : index
    %c0_2 = arith.constant 0 : index
    %1 = vector.load %arg3[%c0_1, %c0_2] : memref<4x256xf32, #tpu.memory_space<vmem>>, vector<4x256xf32>
    %2 = vector.extract_strided_slice %1 {offsets = [0, 0], sizes = [1, 256], strides = [1, 1]} : vector<4x256xf32> to vector<1x256xf32>
    %3 = vector.extract_strided_slice %1 {offsets = [1, 0], sizes = [1, 256], strides = [1, 1]} : vector<4x256xf32> to vector<1x256xf32>
    %4 = vector.extract_strided_slice %1 {offsets = [2, 0], sizes = [1, 256], strides = [1, 1]} : vector<4x256xf32> to vector<1x256xf32>
    %5 = vector.extract_strided_slice %1 {offsets = [3, 0], sizes = [1, 128], strides = [1, 1]} : vector<4x256xf32> to vector<1x128xf32>
    %c0_3 = arith.constant 0 : index
    %c0_4 = arith.constant 0 : index
    %6 = vector.load %arg1[%c0_3, %c0_4] : memref<32x256xf32, #tpu.memory_space<vmem>>, vector<32x256xf32>
    %cst = arith.constant dense<0.000000e+00> : vector<16x256xf32>
    %7 = tpu.matmul %0, %6, %cst {dimension_numbers = #tpu.dot_dimension_numbers<[1], [0], [0], [1], [0, 0, 1, 1], [], []>} : vector<16x32xf32>, vector<32x256xf32>, vector<16x256xf32> -> vector<16x256xf32>
    %8 = vector.broadcast %2 : vector<1x256xf32> to vector<16x256xf32>
    %9 = arith.addf %7, %8 : vector<16x256xf32>
    %cst_5 = arith.constant 0.000000e+00 : f32
    %10 = vector.broadcast %cst_5 : f32 to vector<16x256xf32>
    %11 = arith.maximumf %9, %10 : vector<16x256xf32>
    %cst_6 = arith.constant dense<0.000000e+00> : vector<256xf32>
    %12 = vector.multi_reduction <add>, %11, %cst_6 [0] : vector<16x256xf32> to vector<256xf32>
    %13 = vector.shape_cast %12 : vector<256xf32> to vector<1x256xf32>
    %14 = arith.mulf %11, %11 : vector<16x256xf32>
    %cst_7 = arith.constant dense<0.000000e+00> : vector<256xf32>
    %15 = vector.multi_reduction <add>, %14, %cst_7 [0] : vector<16x256xf32> to vector<256xf32>
    %16 = vector.shape_cast %15 : vector<256xf32> to vector<1x256xf32>
    %cst_8 = arith.constant 6.250000e-02 : f32
    %17 = vector.broadcast %cst_8 : f32 to vector<1x256xf32>
    %18 = arith.mulf %13, %17 : vector<1x256xf32>
    %cst_9 = arith.constant 6.250000e-02 : f32
    %19 = vector.broadcast %cst_9 : f32 to vector<1x256xf32>
    %20 = arith.mulf %16, %19 : vector<1x256xf32>
    %21 = arith.mulf %18, %18 : vector<1x256xf32>
    %22 = arith.subf %20, %21 : vector<1x256xf32>
    %cst_10 = arith.constant 0.000000e+00 : f32
    %23 = vector.broadcast %cst_10 : f32 to vector<1x256xf32>
    %24 = arith.maximumf %22, %23 : vector<1x256xf32>
    %cst_11 = arith.constant 9.99999974E-6 : f32
    %25 = vector.broadcast %cst_11 : f32 to vector<1x256xf32>
    %26 = arith.addf %24, %25 : vector<1x256xf32>
    %27 = math.rsqrt %26 : vector<1x256xf32>
    %28 = arith.mulf %3, %27 : vector<1x256xf32>
    %29 = arith.mulf %18, %28 : vector<1x256xf32>
    %30 = arith.subf %4, %29 : vector<1x256xf32>
    %31 = vector.broadcast %28 : vector<1x256xf32> to vector<16x256xf32>
    %32 = arith.mulf %11, %31 : vector<16x256xf32>
    %33 = vector.broadcast %30 : vector<1x256xf32> to vector<16x256xf32>
    %34 = arith.addf %32, %33 : vector<16x256xf32>
    %c0_12 = arith.constant 0 : index
    %c0_13 = arith.constant 0 : index
    %35 = vector.load %arg2[%c0_12, %c0_13] : memref<256x128xf32, #tpu.memory_space<vmem>>, vector<256x128xf32>
    %cst_14 = arith.constant dense<0.000000e+00> : vector<16x128xf32>
    %36 = tpu.matmul %34, %35, %cst_14 {dimension_numbers = #tpu.dot_dimension_numbers<[1], [0], [0], [1], [0, 0, 1, 1], [], []>} : vector<16x256xf32>, vector<256x128xf32>, vector<16x128xf32> -> vector<16x128xf32>
    %37 = vector.broadcast %5 : vector<1x128xf32> to vector<16x128xf32>
    %38 = arith.addf %36, %37 : vector<16x128xf32>
    %cst_15 = arith.constant dense<0xFF800000> : vector<16xf32>
    %39 = vector.multi_reduction <maximumf>, %38, %cst_15 [1] : vector<16x128xf32> to vector<16xf32>
    %40 = vector.shape_cast %39 : vector<16xf32> to vector<16x1xf32>
    %41 = vector.broadcast %40 : vector<16x1xf32> to vector<16x128xf32>
    %42 = arith.subf %38, %41 : vector<16x128xf32>
    %43 = math.exp %42 : vector<16x128xf32>
    %cst_16 = arith.constant dense<0.000000e+00> : vector<16xf32>
    %44 = vector.multi_reduction <add>, %43, %cst_16 [1] : vector<16x128xf32> to vector<16xf32>
    %45 = vector.shape_cast %44 : vector<16xf32> to vector<16x1xf32>
    %46 = tpu.reciprocal %45 : vector<16x1xf32> -> vector<16x1xf32>
    %47 = vector.broadcast %46 : vector<16x1xf32> to vector<16x128xf32>
    %48 = arith.mulf %43, %47 : vector<16x128xf32>
    %c0_17 = arith.constant 0 : index
    %c0_18 = arith.constant 0 : index
    %49 = vector.load %arg4[%c0_17, %c0_18] : memref<16x128xf32, #tpu.memory_space<vmem>>, vector<16x128xf32>
    tpu.vector_store %arg4[%c0_17, %c0_18], %48 {strides = array<i32>} : memref<16x128xf32, #tpu.memory_space<vmem>>, vector<16x128xf32>,
    return
  }
}

</mosaic_0001>

<llo_original>
// kernel: classnet_forward.1
$region0: #{classnet_forward.1}
  #allocation0 [shape = 'u32[]', space=smem, size = 0x4, offset = 0x4, fixed_abs, tag = 'smem constant byte address 0x4 - core index']
  #allocation1 [shape = 'u32[144,128]{1,0:T(1,128)}', space=vmem, size = 0x12000, scoped, tag = 'internal scratch']
  %s0 = inlined_call_operand.hbm [shape: f32[16,32], index: 0, kind: input, shape index: {}]
  %s1 = inlined_call_operand.hbm [shape: f32[32,256], index: 1, kind: input, shape index: {}]
  %s2 = inlined_call_operand.hbm [shape: f32[256,128], index: 2, kind: input, shape index: {}]
  %s3 = inlined_call_operand.vmem [shape: f32[4,256], index: 3, kind: input, shape index: {}]
  %s4 = inlined_call_operand.hbm [shape: f32[16,128], index: 4, kind: output, shape index: {}]
  %s5 = sld [smem:[#allocation0]]
  $region38: #{classnet_forward.1} parent=0
    _
  %s7 = ssub.s32 1, %s5
  %s8 = scalar_select 0, %s7, %s5
  $region1: #{classnet_forward.1} parent=0
    #allocation2 [shape = 'u8[8192]{0}', space=vmem, size = 0x2000, scoped, tag = 'input window, operand 0, single buffered']
    #allocation3 [shape = 's32[1]{0}', space=sflag, size = 0x4, scoped, tag = 'scoped memory for classnet_forward.1']
    #allocation4 [shape = 's32[1]{0}', space=sflag, size = 0x4, scoped, tag = 'scoped memory for classnet_forward.1']
    #allocation5 [shape = 'u8[32768]{0}', space=vmem, size = 0x8000, scoped, tag = 'input window, operand 1, single buffered']
    #allocation6 [shape = 's32[1]{0}', space=sflag, size = 0x4, scoped, tag = 'scoped memory for classnet_forward.1']
    #allocation7 [shape = 'u8[131072]{0}', space=vmem, size = 0x20000, scoped, tag = 'input window, operand 2, single buffered']
    #allocation8 [shape = 'u8[8192]{0}', space=vmem, size = 0x2000, scoped, tag = 'output window, operand 0, single buffered']
    %9 = vsyncpa [#allocation3], 0
    %10 = vsyncpa [#allocation6], 0
    %11 = vsyncpa [#allocation4], 0
    // Predicated region
    $region2: #{classnet_forward.1} parent=1 // pred_check
      _
    $region3: #{classnet_forward.1} parent=1 // pred_check_branch
      %13 = sbr.rel (0) target = $region5
    $region4: #{classnet_forward.1} parent=1 // pred_region
      %s15 = ssub.s32 256, 256
      %16 = vsyncadd [#allocation3], %s15
      %s17 = sshll.u32 [#allocation2], 4
      %s18 = int_to_ptr.vmem [resolvable:$true] %s17
      %23 = dma.hbm_to_vmem [thread:$0]  %s0, 256, %s18, [#allocation3], 128, 128, 8
    $region5: #{classnet_forward.1} parent=1 // pred_fallthru
      _
    // Predicated region
    $region6: #{classnet_forward.1} parent=1 // pred_check
      _
    $region7: #{classnet_forward.1} parent=1 // pred_check_branch
      %25 = sbr.rel (0) target = $region9
    $region8: #{classnet_forward.1} parent=1 // pred_region
      %s27 = ssub.s32 1024, 1024
      %28 = vsyncadd [#allocation6], %s27
      %s29 = sshll.u32 [#allocation5], 4
      %s30 = int_to_ptr.vmem [resolvable:$true] %s29
      %35 = dma.hbm_to_vmem [thread:$0]  %s1, 1024, %s30, [#allocation6], 256, 256, 16
    $region9: #{classnet_forward.1} parent=1 // pred_fallthru
      _
    // Predicated region
    $region10: #{classnet_forward.1} parent=1 // pred_check
      _
    $region11: #{classnet_forward.1} parent=1 // pred_check_branch
      %37 = sbr.rel (0) target = $region13
    $region12: #{classnet_forward.1} parent=1 // pred_region
      %s39 = ssub.s32 4096, 4096
      %40 = vsyncadd [#allocation6], %s39
      %s41 = sshll.u32 [#allocation7], 4
      %s42 = int_to_ptr.vmem [resolvable:$true] %s41
      %47 = dma.hbm_to_vmem [thread:$0]  %s2, 4096, %s42, [#allocation6], 128, 128, 8
    $region13: #{classnet_forward.1} parent=1 // pred_fallthru
      _
    // Predicated region
    $region14: #{classnet_forward.1} parent=1 // pred_check
      _
    $region15: #{classnet_forward.1} parent=1 // pred_check_branch
      %49 = sbr.rel (0) target = $region17
    $region16: #{classnet_forward.1} parent=1 // pred_region
      _
    $region17: #{classnet_forward.1} parent=1 // pred_fallthru
      _
    // Predicated region
    $region18: #{classnet_forward.1} parent=1 // pred_check
      _
    $region19: #{classnet_forward.1} parent=1 // pred_check_branch
      %51 = sbr.rel (0) target = $region21
    $region20: #{classnet_forward.1} parent=1 // pred_region
      %52 = dma.done [#allocation3], 256
    $region21: #{classnet_forward.1} parent=1 // pred_fallthru
      _
    // Predicated region
    $region22: #{classnet_forward.1} parent=1 // pred_check
      _
    $region23: #{classnet_forward.1} parent=1 // pred_check_branch
      %54 = sbr.rel (0) target = $region25
    $region24: #{classnet_forward.1} parent=1 // pred_region
      %55 = dma.done [#allocation6], 1024
    $region25: #{classnet_forward.1} parent=1 // pred_fallthru
      _
    // Predicated region
    $region26: #{classnet_forward.1} parent=1 // pred_check
      _
    $region27: #{classnet_forward.1} parent=1 // pred_check_branch
      %57 = sbr.rel (0) target = $region29
    $region28: #{classnet_forward.1} parent=1 // pred_region
      %58 = dma.done [#allocation6], 4096
    $region29: #{classnet_forward.1} parent=1 // pred_fallthru
      _
    %v59 = vld [vmem:[#allocation2] sm:$0xff]
    %v60 = vld [vmem:[#allocation2 + $0x8] sm:$0xff]
    %v61 = vld [vmem:[%s3] sm:$0xff]
    %v62 = vld [vmem:[#allocation5] sm:$0xff]
    %v63 = vld [vmem:[#allocation5 + $0x8] sm:$0xff]
    %v64 = vld [vmem:[#allocation5 + $0x10] sm:$0xff]
    %v65 = vld [vmem:[#allocation5 + $0x18] sm:$0xff]
    %v66 = vld [vmem:[#allocation5 + $0x20] sm:$0xff]
    %v67 = vld [vmem:[#allocation5 + $0x28] sm:$0xff]
    %v68 = vld [vmem:[#allocation5 + $0x30] sm:$0xff]
    %v69 = vld [vmem:[#allocation5 + $0x38] sm:$0xff]
    %v71 = vlaneseq
    %v72 = vshrl.u32 %v71, 7
    %v73 = vsub.s32 0, %v72
    %v74 = vrot.slane %v61, %v73
    %v75 = vlaneseq
    %v76 = vshrl.u32 %v75, 7
    %v77 = vsub.s32 4, %v76
    %v78 = vrot.slane %v61, %v77
    %v81 = vlaneseq
    %v82 = vshrl.u32 %v81, 7
    %v83 = vsub.s32 0, %v82
    %v84 = vrot.slane %v74, %v83
    %v85 = vlaneseq
    %v86 = vshrl.u32 %v85, 7
    %v87 = vsub.s32 0, %v86
    %v88 = vrot.slane %v78, %v87
    %vm89 = vcmask 261120
    %v91 = vsel %vm89, %v59, 0
    %v94 = vsel %vm89, %v60, 0
    %96 = vmatprep.subr.mxu0 %v63
    %97 = vmatpush1.msra.mxu0 %v62
    %98 = vmatprep.subr.mxu0 %v65
    %99 = vmatpush1.msra.mxu0 %v64
    %100 = vmatprep.subr.mxu0 %v67
    %101 = vmatpush1.msra.mxu0 %v66
    %102 = vmatprep.subr.mxu0 %v69
    %103 = vmatpush1.msra.mxu0 %v68
    %104 = vmatprep.subr.mxu0 0.0
    %105 = vmatpush1.msra.mxu0 0.0
    %106 = vmatprep.subr.mxu0 0.0
    %107 = vmatpush1.msra.mxu0 0.0
    %108 = vmatprep.subr.mxu0 0.0
    %109 = vmatpush1.msra.mxu0 0.0
    %110 = vmatprep.subr.mxu0 0.0
    %111 = vmatpush1.msra.mxu0 0.0
    %112 = vmatprep.subr.mxu0 0.0
    %113 = vmatpush1.msra.mxu0 0.0
    %114 = vmatprep.subr.mxu0 0.0
    %115 = vmatpush1.msra.mxu0 0.0
    %116 = vmatprep.subr.mxu0 0.0
    %117 = vmatpush1.msra.mxu0 0.0
    %118 = vmatprep.subr.mxu0 0.0
    %119 = vmatpush1.msra.mxu0 0.0
    %120 = vmatprep.subr.mxu0 0.0
    %121 = vmatpush1.msra.mxu0 0.0
    %122 = vmatprep.subr.mxu0 0.0
    %123 = vmatpush1.msra.mxu0 0.0
    %124 = vmatprep.subr.mxu0 0.0
    %125 = vmatpush1.msra.mxu0 0.0
    %126 = vmatprep.subr.mxu0 0.0
    %127 = vmatpush1.msra.mxu0 0.0
    %128 = vmatprep.subr.mxu0 0.0
    %129 = vmatpush1.msra.mxu0 0.0
    %130 = vmatprep.subr.mxu0 0.0
    %131 = vmatpush1.msra.mxu0 0.0
    %132 = vmatprep.subr.mxu0 0.0
    %133 = vmatpush1.msra.mxu0 0.0
    %134 = vmatprep.subr.mxu0 0.0
    %135 = vmatpush1.msra.mxu0 0.0
    %136 = vmatprep.subr.mxu0 0.0
    %137 = vmatpush1.msra.mxu0 0.0
    %138 = vmatprep.subr.mxu0 0.0
    %139 = vmatpush1.msra.mxu0 0.0
    %140 = vmatprep.subr.mxu0 0.0
    %141 = vmatpush1.msra.mxu0 0.0
    %142 = vmatprep.subr.mxu0 0.0
    %143 = vmatpush1.msra.mxu0 0.0
    %144 = vmatprep.subr.mxu0 0.0
    %145 = vmatpush1.msra.mxu0 0.0
    %146 = vmatprep.subr.mxu0 0.0
    %147 = vmatpush1.msra.mxu0 0.0
    %148 = vmatprep.subr.mxu0 0.0
    %149 = vmatpush1.msra.mxu0 0.0
    %150 = vmatprep.subr.mxu0 0.0
    %151 = vmatpush1.msra.mxu0 0.0
    %152 = vmatprep.subr.mxu0 0.0
    %153 = vmatpush1.msra.mxu0 0.0
    %154 = vmatprep.subr.mxu0 0.0
    %155 = vmatpush1.msra.mxu0 0.0
    %156 = vmatprep.subr.mxu0 0.0
    %157 = vmatpush1.msra.mxu0 0.0
    %158 = vmatprep.subr.mxu0 0.0
    %159 = vmatpush1.msra.mxu0 0.0
    %160 = vmatprep.mubr.f32.mxu0 0.0
    %161 = vmatmul.mubr.f32.gmra.mrb[0].mxu0 %v91
    %v162 = vpop.f32.mrb[0].mxu0
    %v163 = vadd.f32 %v84, %v162
    %v164 = vpop.f32.mrb[0].mxu0
    %v165 = vadd.f32 %v88, %v164
    %166 = vmatprep.mubr.f32.mxu0 0.0
    %167 = vmatmul.mubr.f32.gmra.mrb[0].mxu0 %v94
    %v168 = vpop.f32.mrb[0].mxu0
    %v169 = vadd.f32 %v84, %v168
    %v170 = vpop.f32.mrb[0].mxu0
    %v171 = vadd.f32 %v88, %v170
    %172 = vdwg.mxu0
    %v173 = vmax.f32 %v163, 0.0
    %v174 = vmax.f32 %v165, 0.0
    %v175 = vmax.f32 %v169, 0.0
    %v176 = vmax.f32 %v171, 0.0
    %v177 = vadd.f32 %v173, %v175
    %v178 = vrot.slane %v177, 4
    %v179 = vadd.f32 %v177, %v178
    %v180 = vrot.slane %v179, 2
    %v181 = vadd.f32 %v179, %v180
    %v182 = vrot.slane %v181, 1
    %v183 = vadd.f32 %v181, %v182
    %v184 = vadd.f32 %v174, %v176
    %v185 = vrot.slane %v184, 4
    %v186 = vadd.f32 %v184, %v185
    %v187 = vrot.slane %v186, 2
    %v188 = vadd.f32 %v186, %v187
    %v189 = vrot.slane %v188, 1
    %v190 = vadd.f32 %v188, %v189
    %v191 = vmul.f32 %v173, %v173
    %v192 = vmul.f32 %v174, %v174
    %v193 = vmul.f32 %v175, %v175
    %v194 = vmul.f32 %v176, %v176
    %v195 = vadd.f32 %v191, %v193
    %v196 = vrot.slane %v195, 4
    %v197 = vadd.f32 %v195, %v196
    %v198 = vrot.slane %v197, 2
    %v199 = vadd.f32 %v197, %v198
    %v200 = vrot.slane %v199, 1
    %v201 = vadd.f32 %v199, %v200
    %v202 = vadd.f32 %v192, %v194
    %v203 = vrot.slane %v202, 4
    %v204 = vadd.f32 %v202, %v203
    %v205 = vrot.slane %v204, 2
    %v206 = vadd.f32 %v204, %v205
    %v207 = vrot.slane %v206, 1
    %v208 = vadd.f32 %v206, %v207
    %v209 = vmul.f32 %v183, 0.0625
    %v210 = vmul.f32 %v190, 0.0625
    %v211 = vmul.f32 %v201, 0.0625
    %v212 = vmul.f32 %v208, 0.0625
    %v213 = vmul.f32 %v209, %v209
    %v214 = vmul.f32 %v210, %v210
    %v215 = vsub.f32 %v211, %v213
    %v216 = vsub.f32 %v212, %v214
    %v217 = vmax.f32 %v215, 0.0
    %v218 = vmax.f32 %v216, 0.0
    %v219 = vadd.f32 %v217, 1e-05
    %v220 = vadd.f32 %v218, 1e-05
    %v221 = vrsqrt.pop %v219
    %v222 = vrsqrt.pop %v220
    %v225 = vcombine.low %v221, %v222
    %v226 = vrot.slane %v225, 7
    %v228 = vmul.f32 %v61, %v226
    %v230 = vlaneseq
    %v231 = vshrl.u32 %v230, 7
    %v232 = vsub.s32 1, %v231
    %v233 = vrot.slane %v228, %v232
    %v234 = vlaneseq
    %v235 = vshrl.u32 %v234, 7
    %v236 = vsub.s32 5, %v235
    %v237 = vrot.slane %v228, %v236
    %v240 = vmul.f32 %v209, %v233
    %v241 = vmul.f32 %v210, %v237
    %v244 = vcombine.low %v240, %v241
    %v245 = vrot.slane %v244, 6
    %v247 = vsub.f32 %v61, %v245
    %v248 = vlaneseq
    %v249 = vshrl.u32 %v248, 7
    %v250 = vsub.s32 1, %v249
    %v251 = vrot.slane %v233, %v250
    %v252 = vlaneseq
    %v253 = vshrl.u32 %v252, 7
    %v254 = vsub.s32 1, %v253
    %v255 = vrot.slane %v237, %v254
    %v256 = vmul.f32 %v173, %v251
    %v257 = vmul.f32 %v174, %v255
    %v258 = vmul.f32 %v175, %v251
    %v259 = vmul.f32 %v176, %v255
    %v261 = vlaneseq
    %v262 = vshrl.u32 %v261, 7
    %v263 = vsub.s32 2, %v262
    %v264 = vrot.slane %v247, %v263
    %v265 = vlaneseq
    %v266 = vshrl.u32 %v265, 7
    %v267 = vsub.s32 6, %v266
    %v268 = vrot.slane %v247, %v267
    %v271 = vlaneseq
    %v272 = vshrl.u32 %v271, 7
    %v273 = vsub.s32 2, %v272
    %v274 = vrot.slane %v264, %v273
    %v275 = vlaneseq
    %v276 = vshrl.u32 %v275, 7
    %v277 = vsub.s32 2, %v276
    %v278 = vrot.slane %v268, %v277
    %v279 = vadd.f32 %v256, %v274
    %v280 = vadd.f32 %v257, %v278
    %v281 = vadd.f32 %v258, %v274
    %v282 = vadd.f32 %v259, %v278
    %v283 = vld [vmem:[#allocation7] sm:$0xff]
    %v284 = vld [vmem:[#allocation7 + $0x8] sm:$0xff]
    %v285 = vld [vmem:[#allocation7 + $0x10] sm:$0xff]
    %v286 = vld [vmem:[#allocation7 + $0x18] sm:$0xff]
    %v287 = vld [vmem:[#allocation7 + $0x20] sm:$0xff]
    %v288 = vld [vmem:[#allocation7 + $0x28] sm:$0xff]
    %v289 = vld [vmem:[#allocation7 + $0x30] sm:$0xff]
    %v290 = vld [vmem:[#allocation7 + $0x38] sm:$0xff]
    %v291 = vld [vmem:[#allocation7 + $0x40] sm:$0xff]
    %v292 = vld [vmem:[#allocation7 + $0x48] sm:$0xff]
    %v293 = vld [vmem:[#allocation7 + $0x50] sm:$0xff]
    %v294 = vld [vmem:[#allocation7 + $0x58] sm:$0xff]
    %v295 = vld [vmem:[#allocation7 + $0x60] sm:$0xff]
    %v296 = vld [vmem:[#allocation7 + $0x68] sm:$0xff]
    %v297 = vld [vmem:[#allocation7 + $0x70] sm:$0xff]
    %v298 = vld [vmem:[#allocation7 + $0x78] sm:$0xff]
    %v299 = vld [vmem:[#allocation7 + $0x80] sm:$0xff]
    %v300 = vld [vmem:[#allocation7 + $0x88] sm:$0xff]
    %v301 = vld [vmem:[#allocation7 + $0x90] sm:$0xff]
    %v302 = vld [vmem:[#allocation7 + $0x98] sm:$0xff]
    %v303 = vld [vmem:[#allocation7 + $0xa0] sm:$0xff]
    %v304 = vld [vmem:[#allocation7 + $0xa8] sm:$0xff]
    %v305 = vld [vmem:[#allocation7 + $0xb0] sm:$0xff]
    %v306 = vld [vmem:[#allocation7 + $0xb8] sm:$0xff]
    %v307 = vld [vmem:[#allocation7 + $0xc0] sm:$0xff]
    %v308 = vld [vmem:[#allocation7 + $0xc8] sm:$0xff]
    %v309 = vld [vmem:[#allocation7 + $0xd0] sm:$0xff]
    %v310 = vld [vmem:[#allocation7 + $0xd8] sm:$0xff]
    %v311 = vld [vmem:[#allocation7 + $0xe0] sm:$0xff]
    %v312 = vld [vmem:[#allocation7 + $0xe8] sm:$0xff]
    %v313 = vld [vmem:[#allocation7 + $0xf0] sm:$0xff]
    %v314 = vld [vmem:[#allocation7 + $0xf8] sm:$0xff]
    %v315 = vlaneseq
    %v316 = vshrl.u32 %v315, 7
    %v317 = vsub.s32 3, %v316
    %v318 = vrot.slane %v61, %v317
    %319 = vmatprep.subr.mxu0 0.0
    %320 = vmatpush1.msra.mxu0 %v283
    %321 = vmatprep.subr.mxu0 0.0
    %322 = vmatpush1.msra.mxu0 %v284
    %323 = vmatprep.subr.mxu0 0.0
    %324 = vmatpush1.msra.mxu0 %v285
    %325 = vmatprep.subr.mxu0 0.0
    %326 = vmatpush1.msra.mxu0 %v286
    %327 = vmatprep.subr.mxu0 0.0
    %328 = vmatpush1.msra.mxu0 %v287
    %329 = vmatprep.subr.mxu0 0.0
    %330 = vmatpush1.msra.mxu0 %v288
    %331 = vmatprep.subr.mxu0 0.0
    %332 = vmatpush1.msra.mxu0 %v289
    %333 = vmatprep.subr.mxu0 0.0
    %334 = vmatpush1.msra.mxu0 %v290
    %335 = vmatprep.subr.mxu0 0.0
    %336 = vmatpush1.msra.mxu0 %v291
    %337 = vmatprep.subr.mxu0 0.0
    %338 = vmatpush1.msra.mxu0 %v292
    %339 = vmatprep.subr.mxu0 0.0
    %340 = vmatpush1.msra.mxu0 %v293
    %341 = vmatprep.subr.mxu0 0.0
    %342 = vmatpush1.msra.mxu0 %v294
    %343 = vmatprep.subr.mxu0 0.0
    %344 = vmatpush1.msra.mxu0 %v295
    %345 = vmatprep.subr.mxu0 0.0
    %346 = vmatpush1.msra.mxu0 %v296
    %347 = vmatprep.subr.mxu0 0.0
    %348 = vmatpush1.msra.mxu0 %v297
    %349 = vmatprep.subr.mxu0 0.0
    %350 = vmatpush1.msra.mxu0 %v298
    %351 = vmatprep.subr.mxu0 0.0
    %352 = vmatpush1.msra.mxu0 %v299
    %353 = vmatprep.subr.mxu0 0.0
    %354 = vmatpush1.msra.mxu0 %v300
    %355 = vmatprep.subr.mxu0 0.0
    %356 = vmatpush1.msra.mxu0 %v301
    %357 = vmatprep.subr.mxu0 0.0
    %358 = vmatpush1.msra.mxu0 %v302
    %359 = vmatprep.subr.mxu0 0.0
    %360 = vmatpush1.msra.mxu0 %v303
    %361 = vmatprep.subr.mxu0 0.0
    %362 = vmatpush1.msra.mxu0 %v304
    %363 = vmatprep.subr.mxu0 0.0
    %364 = vmatpush1.msra.mxu0 %v305
    %365 = vmatprep.subr.mxu0 0.0
    %366 = vmatpush1.msra.mxu0 %v306
    %367 = vmatprep.subr.mxu0 0.0
    %368 = vmatpush1.msra.mxu0 %v307
    %369 = vmatprep.subr.mxu0 0.0
    %370 = vmatpush1.msra.mxu0 %v308
    %371 = vmatprep.subr.mxu0 0.0
    %372 = vmatpush1.msra.mxu0 %v309
    %373 = vmatprep.subr.mxu0 0.0
    %374 = vmatpush1.msra.mxu0 %v310
    %375 = vmatprep.subr.mxu0 0.0
    %376 = vmatpush1.msra.mxu0 %v311
    %377 = vmatprep.subr.mxu0 0.0
    %378 = vmatpush1.msra.mxu0 %v312
    %379 = vmatprep.subr.mxu0 0.0
    %380 = vmatpush1.msra.mxu0 %v313
    %381 = vmatprep.subr.mxu0 0.0
    %382 = vmatpush1.msra.mxu0 %v314
    %383 = vmatprep.mubr.f32.mxu0 %v280
    %384 = vmatmul.mubr.f32.gmra.mrb[0].mxu0 %v279
    %v385 = vpop.f32.mrb[0].mxu0
    %v386 = vadd.f32 %v318, %v385
    %v387 = vpop.f32.mrb[0].mxu0
    %388 = vmatprep.mubr.f32.mxu0 %v282
    %389 = vmatmul.mubr.f32.gmra.mrb[0].mxu0 %v281
    %v390 = vpop.f32.mrb[0].mxu0
    %v391 = vadd.f32 %v318, %v390
    %v392 = vpop.f32.mrb[0].mxu0
    %393 = vdwg.mxu0
    %394 = vmax.xlane.f32.xlu0 %v386
    %v395 = vpop.xlane.xlu0 %394
    %396 = vmax.xlane.f32.xlu0 %v391
    %v397 = vpop.xlane.xlu0 %396
    %v398 = vsub.f32 %v386, %v395
    %v399 = vsub.f32 %v391, %v397
    %v400 = vmul.f32 %v398, 1.442695
    %v401 = vpow.pop %v400
    %v402 = vmul.f32 %v399, 1.442695
    %v403 = vpow.pop %v402
    %404 = vadd.xlane.f32.xlu0 %v401
    %v405 = vpop.xlane.xlu0 %404
    %406 = vadd.xlane.f32.xlu0 %v403
    %v407 = vpop.xlane.xlu0 %406
    %v408 = vrcp.pop %v405
    %v409 = vrcp.pop %v407
    %v410 = vmul.f32 %v401, %v408
    %v411 = vmul.f32 %v403, %v409
    %412 = vst [vmem:[#allocation8] sm:$0xff] %v410
    %413 = vst [vmem:[#allocation8 + $0x8] sm:$0xff] %v411
    // Predicated region
    $region30: #{classnet_forward.1} parent=1 // pred_check
      _
    $region31: #{classnet_forward.1} parent=1 // pred_check_branch
      %415 = sbr.rel (0) target = $region33
    $region32: #{classnet_forward.1} parent=1 // pred_region
      %s417 = ssub.s32 256, 256
      %418 = vsyncadd [#allocation4], %s417
      %s419 = sshll.u32 [#allocation8], 4
      %s420 = int_to_ptr.vmem [resolvable:$true] %s419
      %425 = dma.vmem_to_hbm [thread:$0]  %s420, 256, %s4, [#allocation4], 128, 128, 8
    $region33: #{classnet_forward.1} parent=1 // pred_fallthru
      _
    // Predicated region
    $region34: #{classnet_forward.1} parent=1 // pred_check
      _
    $region35: #{classnet_forward.1} parent=1 // pred_check_branch
      %427 = sbr.rel (0) target = $region37
    $region36: #{classnet_forward.1} parent=1 // pred_region
      %428 = dma.done [#allocation4], 256
    $region37: #{classnet_forward.1} parent=1 // pred_fallthru
      _
    %429 = vsyncpa [#allocation3], 1
    %430 = vsyncpa [#allocation6], 1
    %431 = vsyncpa [#allocation4], 1

</llo_original>
